<compile_context>
chip_gen: v7x
topology: tpu7x:2x2x1
jax: 0.10.0
libtpu: 0.0.40
codegen_flags: <defaults>
</compile_context>

<pallas_src>
from functools import partial

import jax
import jax.numpy as jnp
from jax.experimental import pallas as pl
from jax.experimental.pallas import tpu as pltpu


LANE = 128


def _round_up(a, b):
    return ((a + b - 1) // b) * b


def _physical_vmem_bytes():
    """Physical VMEM per TensorCore (128 MiB on v5e/v6e, 64 MiB on v7x)."""
    try:
        return int(pltpu.get_tpu_info().vmem_capacity_bytes)
    except Exception:
        return 64 << 20          # conservative fallback: never over-request


def _vmem_needed(tm, Dp, th, itemsize, weight_bufs):
    """VMEM footprint of one pipelined step, incl. materialized intermediates."""
    return (2 * tm * Dp * itemsize                    # x tile, double-buffered
            + weight_bufs * Dp * 2 * th * itemsize    # fused gate|up weight tiles
            + weight_bufs * th * Dp * itemsize        # down-proj weight tiles
            + 2 * tm * Dp * itemsize                  # out tile, double-buffered
            + tm * Dp * 4                             # f32 accumulator scratch
            + tm * 2 * th * 4                         # gu (f32 MXU result)
            + tm * th * 4                             # act (f32)
            + tm * th * itemsize)                     # act downcast for MXU feed


def _select_hidden_tile(H, vmem_cap):
    # Smaller hidden tile on 64 MiB chips (v7x) halves the weight double-buffers
    # so the row tile can stay large; 512 elsewhere.
    desired = 256 if vmem_cap <= (64 << 20) else 512
    return min(desired, _round_up(H, LANE))


def _select_row_tile(M, Dp, th, dtype, vmem_cap, nh):
    itemsize = jnp.dtype(dtype).itemsize
    row_align = 16 if itemsize == 2 else 8           # bf16 sublane packing min
    budget = int(vmem_cap * 0.9) - (4 << 20)         # headroom for Mosaic scratch

    m_cap = _round_up(M, row_align)
    tm = row_align
    for c in (1024, 768, 512, 384, 256, 128, 64, 32, 16, 8):
        c = _round_up(c, row_align)
        if c > m_cap:
            continue
        if _vmem_needed(c, Dp, th, itemsize, 2) <= budget:
            tm = c
            break
    ideal = _round_up(min(1024, m_cap), row_align)
    vmem_capped = _vmem_needed(ideal, Dp, th, itemsize, 2) > budget

    # Small-M (decode): split rows into >=2 tiles so the "parallel" grid axis
    # has work for both v7x TensorCores.
    if m_cap <= tm and M >= 2 * row_align:
        tm = _round_up(-(-M // 2), row_align)

    # Deeper buffering on the weight streams only when the row tile is
    # VMEM-capped (not M-capped) and there are enough reduction steps to hide DMA.
    weight_bufs = 2
    if vmem_capped and nh >= 3 and _vmem_needed(tm, Dp, th, itemsize, 3) <= budget:
        weight_bufs = 3

    needed = _vmem_needed(tm, Dp, th, itemsize, weight_bufs)
    vmem_limit = min(max(int(needed * 1.2) + (8 << 20), 32 << 20), vmem_cap)
    return tm, weight_bufs, vmem_limit


def _ffn_kernel(x_ref, wgu_ref, wd_ref, o_ref, acc_ref):
    h = pl.program_id(1)

    @pl.when(h == 0)
    def _init():
        acc_ref[...] = jnp.zeros_like(acc_ref)

    x = x_ref[...]                                    # (tm, Dp)
    gu = jnp.dot(x, wgu_ref[...],                     # (tm, 2*th), f32
                 preferred_element_type=jnp.float32)
    th = gu.shape[-1] // 2
    g = gu[:, :th]
    u = gu[:, th:]
    act = (g * jax.nn.sigmoid(g)) * u                 # SiLU(gate) * up, f32
    acc_ref[...] += jnp.dot(act.astype(x.dtype), wd_ref[...],
                            preferred_element_type=jnp.float32)     # (tm, Dp)

    @pl.when(h == pl.num_programs(1) - 1)
    def _finish():
        o_ref[...] = acc_ref[...].astype(o_ref.dtype)


def prepare_ffn_weights(w_gate, w_up, w_down, *, th=None):
    """One-time (parameter-load-time) weight layout prep: pad to lane multiples,
    fuse gate|up into one slab per hidden tile, pre-transpose.  Hoisted out of
    the per-call hot path so no extra HBM pass happens every forward."""
    D, H = w_gate.shape
    assert w_up.shape == (D, H) and w_down.shape == (H, D)
    vmem_cap = _physical_vmem_bytes()
    if th is None:
        th = _select_hidden_tile(H, vmem_cap)
    Dp = _round_up(D, LANE)
    Hp = _round_up(H, th)
    nh = Hp // th

    wg = jnp.pad(w_gate, ((0, Dp - D), (0, Hp - H)))
    wu = jnp.pad(w_up,   ((0, Dp - D), (0, Hp - H)))
    wd = jnp.pad(w_down, ((0, Hp - H), (0, Dp - D)))
    # (nh, Dp, 2*th) fused gate|up, flattened to 2D -> plain (Dp, 2*th) blocks,
    # no size-1 leading axis in the kernel.
    wgu = jnp.concatenate(
        [wg.reshape(Dp, nh, th), wu.reshape(Dp, nh, th)], axis=-1
    ).transpose(1, 0, 2).reshape(nh * Dp, 2 * th)

    return dict(wgu=wgu, wd=wd, D=D, Dp=Dp, H=H, Hp=Hp, th=th, nh=nh,
                vmem_cap=vmem_cap)


def feed_forward_prepared(x, prepared):
    """x: (B, S, D); prepared: output of prepare_ffn_weights. Returns (B, S, D)."""
    B, S, D = x.shape
    assert D == prepared["D"]
    Dp, Hp = prepared["Dp"], prepared["Hp"]
    th, nh = prepared["th"], prepared["nh"]
    wgu, wd = prepared["wgu"], prepared["wd"]
    M = B * S
    dt = x.dtype
    itemsize = jnp.dtype(dt).itemsize

    tm, weight_bufs, vmem_limit = _select_row_tile(
        M, Dp, th, dt, prepared["vmem_cap"], nh)
    Mp = _round_up(M, tm)

    x2 = jnp.pad(x.reshape(M, D), ((0, Mp - M), (0, Dp - D)))

    flops = 6 * Mp * Dp * Hp                # 2*M*D*2H (gate+up) + 2*M*H*D (down)
    bytes_accessed = (2 * Mp * Dp * itemsize
                      + (Mp // tm) * 3 * Dp * Hp * itemsize)   # streamed weights

    wkw = {} if weight_bufs == 2 else {"pipeline_mode": pl.Buffered(weight_bufs)}
    wgu_spec = pl.BlockSpec((Dp, 2 * th), lambda i, h: (h, 0), **wkw)
    wd_spec = pl.BlockSpec((th, Dp), lambda i, h: (h, 0), **wkw)

    out2 = pl.pallas_call(
        _ffn_kernel,
        out_shape=jax.ShapeDtypeStruct((Mp, Dp), dt),
        grid_spec=pltpu.PrefetchScalarGridSpec(
            num_scalar_prefetch=0,
            grid=(Mp // tm, nh),                       # reduction axis (H) last
            in_specs=[
                pl.BlockSpec((tm, Dp), lambda i, h: (i, 0)),   # x rows
                wgu_spec,                                      # fused gate|up tile
                wd_spec,                                       # down-proj tile
            ],
            out_specs=pl.BlockSpec((tm, Dp), lambda i, h: (i, 0)),
            scratch_shapes=[pltpu.VMEM((tm, Dp), jnp.float32)],
        ),
        compiler_params=pltpu.CompilerParams(
            dimension_semantics=("parallel", "arbitrary"),
            vmem_limit_bytes=vmem_limit,
        ),
        cost_estimate=pl.CostEstimate(
            flops=flops,
            transcendentals=2 * Mp * Hp,               # sigmoid = exp + reciprocal
            bytes_accessed=bytes_accessed,
        ),
    )(x2, wgu, wd)

    return out2[:M, :D].reshape(B, S, D)


def feed_forward(x, w_gate, w_up, w_down):
    """Convenience wrapper. In a real model call prepare_ffn_weights ONCE at
    parameter-load time and reuse it; doing it per call costs an extra HBM pass."""
    return feed_forward_prepared(x, prepare_ffn_weights(w_gate, w_up, w_down))


def feed_forward_ref(x, w_gate, w_up, w_down):
    g = x @ w_gate
    u = x @ w_up
    return (jax.nn.silu(g) * u) @ w_down


if __name__ == "__main__":
    embedding_dim = 32
    hidden_dim = 64
    batch, seq = 2, 8

    key = jax.random.PRNGKey(0)
    kx, kg, ku, kd = jax.random.split(key, 4)

    x = jax.random.normal(kx, (batch, seq, embedding_dim), dtype=jnp.float32)
    # Deterministic parameter init; stored already transposed to (in, out)
    # (== nn.Linear weight.T so the kernel computes x @ W.T like PyTorch).
    w_gate = jax.random.normal(kg, (embedding_dim, hidden_dim), jnp.float32) * 0.05
    w_up   = jax.random.normal(ku, (embedding_dim, hidden_dim), jnp.float32) * 0.05
    w_down = jax.random.normal(kd, (hidden_dim, embedding_dim), jnp.float32) * 0.05

    # Weight layout prep hoisted out of the hot path (done once), then a jitted
    # forward over activations only.
    prepared = prepare_ffn_weights(w_gate, w_up, w_down)
    ffn = jax.jit(partial(feed_forward_prepared, prepared=prepared))

    out = jax.block_until_ready(ffn(x))

    ref = feed_forward_ref(x, w_gate, w_up, w_down)
    assert out.shape == (batch, seq, embedding_dim)
    assert jnp.allclose(out, ref, atol=1e-5, rtol=1e-5)

    print("KERNEL_OK")
</pallas_src>

<mosaic_0001>
module attributes {stable_mosaic.version = 11 : i64} {
  func.func @_ffn_kernel(%arg0: i32, %arg1: i32, %arg2: memref<8x128xf32, #tpu.memory_space<vmem>>, %arg3: memref<128x256xf32, #tpu.memory_space<vmem>>, %arg4: memref<128x128xf32, #tpu.memory_space<vmem>>, %arg5: memref<8x128xf32, #tpu.memory_space<vmem>>, %arg6: memref<8x128xf32, #tpu.memory_space<vmem>>) attributes {dimension_semantics = [#tpu.dimension_semantics<parallel>, #tpu.dimension_semantics<arbitrary>], iteration_bounds = array<i64: 2, 1>, scalar_prefetch = 0 : i64, scratch_operands = 1 : i64, tpu.core_type = #tpu.core_type<tc>, window_params = [{transform_indices = @transform_0, window_bounds = array<i64: 8, 128>}, {transform_indices = @transform_1, window_bounds = array<i64: 128, 256>}, {transform_indices = @transform_2, window_bounds = array<i64: 128, 128>}, {transform_indices = @transform_3, window_bounds = array<i64: 8, 128>}]} {
    %c0_i32 = arith.constant 0 : i32
    %0 = arith.cmpi eq, %arg1, %c0_i32 : i32
    %1 = arith.extui %0 : i1 to i32
    %c0_i32_0 = arith.constant 0 : i32
    %2 = arith.cmpi ne, %1, %c0_i32_0 : i32
    scf.if %2 {
      %cst_14 = arith.constant 0.000000e+00 : f32
      %23 = vector.broadcast %cst_14 : f32 to vector<8x128xf32>
      %c0_15 = arith.constant 0 : index
      %c0_16 = arith.constant 0 : index
      %24 = vector.load %arg6[%c0_15, %c0_16] : memref<8x128xf32, #tpu.memory_space<vmem>>, vector<8x128xf32>
      tpu.vector_store %arg6[%c0_15, %c0_16], %23 {strides = array<i32>} : memref<8x128xf32, #tpu.memory_space<vmem>>, vector<8x128xf32>,
    } else {
    }
    %c0 = arith.constant 0 : index
    %c0_1 = arith.constant 0 : index
    %3 = vector.load %arg2[%c0, %c0_1] : memref<8x128xf32, #tpu.memory_space<vmem>>, vector<8x128xf32>
    %c0_2 = arith.constant 0 : index
    %c0_3 = arith.constant 0 : index
    %4 = vector.load %arg3[%c0_2, %c0_3] : memref<128x256xf32, #tpu.memory_space<vmem>>, vector<128x256xf32>
    %cst = arith.constant dense<0.000000e+00> : vector<8x256xf32>
    %5 = tpu.matmul %3, %4, %cst {dimension_numbers = #tpu.dot_dimension_numbers<[1], [0], [0], [1], [0, 0, 1, 1], [], []>} : vector<8x128xf32>, vector<128x256xf32>, vector<8x256xf32> -> vector<8x256xf32>
    %6 = vector.extract_strided_slice %5 {offsets = [0, 0], sizes = [8, 128], strides = [1, 1]} : vector<8x256xf32> to vector<8x128xf32>
    %7 = vector.extract_strided_slice %5 {offsets = [0, 128], sizes = [8, 128], strides = [1, 1]} : vector<8x256xf32> to vector<8x128xf32>
    %8 = arith.negf %6 : vector<8x128xf32>
    %9 = math.exp %8 : vector<8x128xf32>
    %cst_4 = arith.constant 1.000000e+00 : f32
    %10 = vector.broadcast %cst_4 : f32 to vector<8x128xf32>
    %11 = arith.addf %10, %9 : vector<8x128xf32>
    %12 = arith.divf %10, %11 : vector<8x128xf32>
    %13 = arith.mulf %6, %12 : vector<8x128xf32>
    %14 = arith.mulf %13, %7 : vector<8x128xf32>
    %c0_5 = arith.constant 0 : index
    %c0_6 = arith.constant 0 : index
    %15 = vector.load %arg6[%c0_5, %c0_6] : memref<8x128xf32, #tpu.memory_space<vmem>>, vector<8x128xf32>
    %c0_7 = arith.constant 0 : index
    %c0_8 = arith.constant 0 : index
    %16 = vector.load %arg4[%c0_7, %c0_8] : memref<128x128xf32, #tpu.memory_space<vmem>>, vector<128x128xf32>
    %cst_9 = arith.constant dense<0.000000e+00> : vector<8x128xf32>
    %17 = tpu.matmul %14, %16, %cst_9 {dimension_numbers = #tpu.dot_dimension_numbers<[1], [0], [0], [1], [0, 0, 1, 1], [], []>} : vector<8x128xf32>, vector<128x128xf32>, vector<8x128xf32> -> vector<8x128xf32>
    %18 = arith.addf %15, %17 : vector<8x128xf32>
    %c0_10 = arith.constant 0 : index
    %c0_11 = arith.constant 0 : index
    %19 = vector.load %arg6[%c0_10, %c0_11] : memref<8x128xf32, #tpu.memory_space<vmem>>, vector<8x128xf32>
    tpu.vector_store %arg6[%c0_10, %c0_11], %18 {strides = array<i32>} : memref<8x128xf32, #tpu.memory_space<vmem>>, vector<8x128xf32>,
    %c0_i32_12 = arith.constant 0 : i32
    %20 = arith.cmpi eq, %arg1, %c0_i32_12 : i32
    %21 = arith.extui %20 : i1 to i32
    %c0_i32_13 = arith.constant 0 : i32
    %22 = arith.cmpi ne, %21, %c0_i32_13 : i32
    scf.if %22 {
      %c0_14 = arith.constant 0 : index
      %c0_15 = arith.constant 0 : index
      %23 = vector.load %arg6[%c0_14, %c0_15] : memref<8x128xf32, #tpu.memory_space<vmem>>, vector<8x128xf32>
      %c0_16 = arith.constant 0 : index
      %c0_17 = arith.constant 0 : index
      %24 = vector.load %arg5[%c0_16, %c0_17] : memref<8x128xf32, #tpu.memory_space<vmem>>, vector<8x128xf32>
      tpu.vector_store %arg5[%c0_16, %c0_17], %23 {strides = array<i32>} : memref<8x128xf32, #tpu.memory_space<vmem>>, vector<8x128xf32>,
    } else {
    }
    return
  }
  func.func @transform_0(%arg0: i32, %arg1: i32) -> (i32, i32) {
    %c0_i32 = arith.constant 0 : i32
    %c0_i32_0 = arith.constant 0 : i32
    return %arg0, %c0_i32 : i32, i32
  }
  func.func @transform_1(%arg0: i32, %arg1: i32) -> (i32, i32) {
    %c0_i32 = arith.constant 0 : i32
    %c0_i32_0 = arith.constant 0 : i32
    return %arg1, %c0_i32 : i32, i32
  }
  func.func @transform_2(%arg0: i32, %arg1: i32) -> (i32, i32) {
    %c0_i32 = arith.constant 0 : i32
    %c0_i32_0 = arith.constant 0 : i32
    return %arg1, %c0_i32 : i32, i32
  }
  func.func @transform_3(%arg0: i32, %arg1: i32) -> (i32, i32) {
    %c0_i32 = arith.constant 0 : i32
    %c0_i32_0 = arith.constant 0 : i32
    return %arg0, %c0_i32 : i32, i32
  }
}

</mosaic_0001>

<llo_original>
// kernel: feed_forward_prepared.1
$region0: #{feed_forward_prepared.1}
  #allocation0 [shape = 'u32[]', space=smem, size = 0x4, offset = 0x4, fixed_abs, tag = 'smem constant byte address 0x4 - core index']
  #allocation1 [shape = 'u32[144,128]{1,0:T(1,128)}', space=vmem, size = 0x12000, scoped, tag = 'internal scratch']
  #allocation2 [shape = 'f32[8,128]{1,0:T(8,128)}', space=vmem, size = 0x1000, scoped, tag = 'scratch operand']
  %s0 = inlined_call_operand.vmem [shape: f32[16,128], index: 0, kind: input, shape index: {}]
  %s1 = inlined_call_operand.hbm [shape: f32[128,256], index: 1, kind: input, shape index: {}]
  %s2 = inlined_call_operand.hbm [shape: f32[128,128], index: 2, kind: input, shape index: {}]
  %s3 = inlined_call_operand.vmem [shape: f32[16,128], index: 3, kind: output, shape index: {}]
  %s4 = sld [smem:[#allocation0]]
  $region61: #{feed_forward_prepared.1} parent=0
    _
  %s6 = ssub.s32 1, %s4
  %s7 = scalar_select 0, %s6, %s4
  $region1: #{feed_forward_prepared.1} parent=0
    #allocation3 [shape = 'u8[131072]{0}', space=vmem, size = 0x20000, scoped, tag = 'input window, operand 1, single buffered']
    #allocation4 [shape = 's32[2]{0}', space=sflag, size = 0x8, scoped, tag = 'scoped memory for feed_forward_prepared.1']
    #allocation5 [shape = 'u8[65536]{0}', space=vmem, size = 0x10000, scoped, tag = 'input window, operand 2, single buffered']
    #allocation6 [shape = 's32[1]{0}', space=sflag, size = 0x4, scoped, tag = 'scoped memory for feed_forward_prepared.1']
    %8 = vsyncpa [#allocation4], 0
    %9 = vsyncpa [#allocation6], 0
    loop: start=0, step=1, limit=4
    $region2: #{feed_forward_prepared.1} parent=1 // loop_pre_header
      _
    $region3: #{feed_forward_prepared.1} parent=1 // loop_header
      %s11 = sphi 0, %s15
      %p12 = scmp.ge.s32.totalorder %s11, 4
      %s18 = sphi 0, %s30
      %s19 = sphi 0, %s26
      %s20 = sphi 0, %s18
      %s21 = sphi 0, %s19
      %s22 = sphi 0, %s20
      %s23 = sphi 0, %s21
      %s33 = sphi 0, %s35
      %s36 = sphi 0, %s33
      %s37 = sphi 0, %s36
      %s53 = sphi 0, %s37
      %s59 = sphi 0, %s61
      %s62 = sphi 0, %s59
      %s63 = sphi 0, %s62
      %s79 = sphi 0, %s63
      %s85 = sphi 0, %s87
      %s88 = sphi 0, %s85
      %s89 = sphi 0, %s88
      %s105 = sphi 0, %s89
      %s111 = sphi 0, %s113
      %s114 = sphi 0, %s111
      %s115 = sphi 0, %s114
      %s131 = sphi 0, %s115
    $region4: #{feed_forward_prepared.1} parent=1 // loop_header_branch
      %14 = sbr.rel (%p12) target = $region8
    $region5: #{feed_forward_prepared.1} parent=1 // loop_body
      %s16 = ssub.s32 %s11, 1
      %s17 = ssub.s32 %s11, 2
      %s24 = sadd.s32 1, %s19
      %p25 = scmp.ge.s32.totalorder %s24, 1
      %s26 = scalar_select %p25, 0, %s24
      %s27 = sadd.s32 1, %s18
      %s28 = scalar_select %p25, %s27, %s18
      %p29 = scmp.ge.s32.totalorder %s28, 2
      %s30 = scalar_select %p29, 0, %s28
      %s31 = ssub.s32 %s18, %s30
      %p32 = scmp.eq.s32.totalorder %s31, 0
      %s34 = sadd.s32 %s33, 1
      %s35 = scalar_select %p32, %s33, %s34
      %p38 = pneg %p32
      %p39 = scmp.eq.s32.totalorder %s11, 1
      %p40 = por %p38, %p39
      %p41 = scmp.ne.s32.totalorder %s33, %s36
      %p42 = scmp.eq.s32.totalorder %s11, 0
      %p43 = por %p41, %p42
      %p44 = scmp.ne.s32.totalorder %s33, %s36
      %p45 = scmp.eq.s32.totalorder %s16, 1
      %p46 = por %p44, %p45
      %p47 = scmp.ne.s32.totalorder %s36, %s37
      %p48 = scmp.eq.s32.totalorder %s16, 0
      %p49 = por %p47, %p48
      %p50 = scmp.ne.s32.totalorder %s36, %s37
      %p51 = scmp.eq.s32.totalorder %s17, 1
      %p52 = por %p50, %p51
      %p54 = scmp.ne.s32.totalorder %s37, %s53
      %p55 = scmp.eq.s32.totalorder %s17, 0
      %p56 = por %p54, %p55
      %s57 = ssub.s32 %s19, %s26
      %p58 = scmp.eq.s32.totalorder %s57, 0
      %s60 = sadd.s32 %s59, 1
      %s61 = scalar_select %p58, %s59, %s60
      %p64 = pneg %p58
      %p65 = scmp.eq.s32.totalorder %s11, 1
      %p66 = por %p64, %p65
      %p67 = scmp.ne.s32.totalorder %s59, %s62
      %p68 = scmp.eq.s32.totalorder %s11, 0
      %p69 = por %p67, %p68
      %p70 = scmp.ne.s32.totalorder %s59, %s62
      %p71 = scmp.eq.s32.totalorder %s16, 1
      %p72 = por %p70, %p71
      %p73 = scmp.ne.s32.totalorder %s62, %s63
      %p74 = scmp.eq.s32.totalorder %s16, 0
      %p75 = por %p73, %p74
      %p76 = scmp.ne.s32.totalorder %s62, %s63
      %p77 = scmp.eq.s32.totalorder %s17, 1
      %p78 = por %p76, %p77
      %p80 = scmp.ne.s32.totalorder %s63, %s79
      %p81 = scmp.eq.s32.totalorder %s17, 0
      %p82 = por %p80, %p81
      %s83 = ssub.s32 %s19, %s26
      %p84 = scmp.eq.s32.totalorder %s83, 0
      %s86 = sadd.s32 %s85, 1
      %s87 = scalar_select %p84, %s85, %s86
      %p90 = pneg %p84
      %p91 = scmp.eq.s32.totalorder %s11, 1
      %p92 = por %p90, %p91
      %p93 = scmp.ne.s32.totalorder %s85, %s88
      %p94 = scmp.eq.s32.totalorder %s11, 0
      %p95 = por %p93, %p94
      %p96 = scmp.ne.s32.totalorder %s85, %s88
      %p97 = scmp.eq.s32.totalorder %s16, 1
      %p98 = por %p96, %p97
      %p99 = scmp.ne.s32.totalorder %s88, %s89
      %p100 = scmp.eq.s32.totalorder %s16, 0
      %p101 = por %p99, %p100
      %p102 = scmp.ne.s32.totalorder %s88, %s89
      %p103 = scmp.eq.s32.totalorder %s17, 1
      %p104 = por %p102, %p103
      %p106 = scmp.ne.s32.totalorder %s89, %s105
      %p107 = scmp.eq.s32.totalorder %s17, 0
      %p108 = por %p106, %p107
      %s109 = ssub.s32 %s18, %s30
      %p110 = scmp.eq.s32.totalorder %s109, 0
      %s112 = sadd.s32 %s111, 1
      %s113 = scalar_select %p110, %s111, %s112
      %p116 = pneg %p110
      %p117 = scmp.eq.s32.totalorder %s11, 1
      %p118 = por %p116, %p117
      %p119 = scmp.ne.s32.totalorder %s111, %s114
      %p120 = scmp.eq.s32.totalorder %s11, 0
      %p121 = por %p119, %p120
      %p122 = scmp.ne.s32.totalorder %s111, %s114
      %p123 = scmp.eq.s32.totalorder %s16, 1
      %p124 = por %p122, %p123
      %p125 = scmp.ne.s32.totalorder %s114, %s115
      %p126 = scmp.eq.s32.totalorder %s16, 0
      %p127 = por %p125, %p126
      %p128 = scmp.ne.s32.totalorder %s114, %s115
      %p129 = scmp.eq.s32.totalorder %s17, 1
      %p130 = por %p128, %p129
      %p132 = scmp.ne.s32.totalorder %s115, %s131
      %p133 = scmp.eq.s32.totalorder %s17, 0
      %p134 = por %p132, %p133
      %p135 = scmp.le.s32.totalorder 1, %s11
      %p136 = scmp.lt.s32.totalorder %s11, 3
      %p137 = pnand %p135, %p136
      %p138 = pneg %p137
      // Predicated region
      $region9: #{feed_forward_prepared.1} parent=5 // pred_check
        _
      $region10: #{feed_forward_prepared.1} parent=5 // pred_check_branch
        %140 = sbr.rel (%p137) target = $region12
      $region11: #{feed_forward_prepared.1} parent=5 // pred_region
        %s141 = ssub.s32 %s11, 1
        // Predicated region
        $region13: #{feed_forward_prepared.1} parent=11 // pred_check
          %p142 = pneg %p75
        $region14: #{feed_forward_prepared.1} parent=11 // pred_check_branch
          %144 = sbr.rel (%p142) target = $region16
        $region15: #{feed_forward_prepared.1} parent=11 // pred_region
          %s145 = smul.u32 16, %s21
          %s147 = ssub.s32 4096, 4096
          %148 = vsyncadd [#allocation4], %s147
          %s149 = smul.addr %s145, 2
          %s150 = smul.addr %s149, 128
          %s151 = scalar_lea.hbm %s1, %s150
          %s152 = sshll.u32 [#allocation3], 4
          %s153 = int_to_ptr.vmem [resolvable:$true] %s152
          %158 = dma.hbm_to_vmem [thread:$0]  %s151, 4096, %s153, [#allocation4], 256, 256, 16
        $region16: #{feed_forward_prepared.1} parent=11 // pred_fallthru
          _
        // Predicated region
        $region17: #{feed_forward_prepared.1} parent=11 // pred_check
          %p159 = pneg %p101
        $region18: #{feed_forward_prepared.1} parent=11 // pred_check_branch
          %161 = sbr.rel (%p159) target = $region20
        $region19: #{feed_forward_prepared.1} parent=11 // pred_region
          %s162 = smul.u32 16, %s21
          %s164 = ssub.s32 2048, 2048
          %165 = vsyncadd [#allocation6], %s164
          %s166 = smul.addr %s162, 128
          %s167 = scalar_lea.hbm %s2, %s166
          %s168 = sshll.u32 [#allocation5], 4
          %s169 = int_to_ptr.vmem [resolvable:$true] %s168
          %174 = dma.hbm_to_vmem [thread:$0]  %s167, 2048, %s169, [#allocation6], 128, 128, 8
        $region20: #{feed_forward_prepared.1} parent=11 // pred_fallthru
          _
      $region12: #{feed_forward_prepared.1} parent=5 // pred_fallthru
        _
      %p175 = scmp.lt.s32.totalorder %s11, 2
      // Predicated region
      $region21: #{feed_forward_prepared.1} parent=5 // pred_check
        %p176 = pneg %p175
      $region22: #{feed_forward_prepared.1} parent=5 // pred_check_branch
        %178 = sbr.rel (%p176) target = $region24
      $region23: #{feed_forward_prepared.1} parent=5 // pred_region
        // Predicated region
        $region25: #{feed_forward_prepared.1} parent=23 // pred_check
          %p179 = pneg %p43
        $region26: #{feed_forward_prepared.1} parent=23 // pred_check_branch
          %181 = sbr.rel (%p179) target = $region28
        $region27: #{feed_forward_prepared.1} parent=23 // pred_region
          %p182 = scmp.lt.s32.totalorder %s18, 1
          %s183 = scalar_select %p182, %s18, 1
          %s184 = smul.addr %s183, 8
          %s185 = scalar_lea.vmem %s0, %s184
        $region28: #{feed_forward_prepared.1} parent=23 // pred_fallthru
          _
      $region24: #{feed_forward_prepared.1} parent=5 // pred_fallthru
        _
      %p186 = scmp.le.s32.totalorder 1, %s11
      %p187 = scmp.lt.s32.totalorder %s11, 3
      %p188 = pnand %p186, %p187
      %p189 = pneg %p188
      // Predicated region
      $region29: #{feed_forward_prepared.1} parent=5 // pred_check
        _
      $region30: #{feed_forward_prepared.1} parent=5 // pred_check_branch
        %191 = sbr.rel (%p188) target = $region32
      $region31: #{feed_forward_prepared.1} parent=5 // pred_region
        %s192 = ssub.s32 %s11, 1
        // Predicated region
        $region33: #{feed_forward_prepared.1} parent=31 // pred_check
          %p193 = pneg %p75
        $region34: #{feed_forward_prepared.1} parent=31 // pred_check_branch
          %195 = sbr.rel (%p193) target = $region36
        $region35: #{feed_forward_prepared.1} parent=31 // pred_region
          %196 = dma.done [#allocation4], 4096
        $region36: #{feed_forward_prepared.1} parent=31 // pred_fallthru
          _
        // Predicated region
        $region37: #{feed_forward_prepared.1} parent=31 // pred_check
          %p197 = pneg %p101
        $region38: #{feed_forward_prepared.1} parent=31 // pred_check_branch
          %199 = sbr.rel (%p197) target = $region40
        $region39: #{feed_forward_prepared.1} parent=31 // pred_region
          %200 = dma.done [#allocation6], 2048
        $region40: #{feed_forward_prepared.1} parent=31 // pred_fallthru
          _
        %p201 = scmp.lt.s32.totalorder %s20, 1
        %s202 = scalar_select %p201, %s20, 1
        %s203 = smul.addr %s202, 8
        %s204 = scalar_lea.vmem %s0, %s203
        %p205 = pneg %p49
        %p206 = pneg %p46
        %p207 = pneg %p75
        %p208 = pneg %p72
        %p209 = pneg %p101
        %p210 = pneg %p98
        %p211 = pneg %p127
        %p212 = pneg %p124
        %p213 = scmp.lt.s32.totalorder %s20, 1
        %s214 = scalar_select %p213, %s20, 1
        %s215 = smul.addr %s214, 8
        %s216 = scalar_lea.vmem %s3, %s215
        %p217 = scmp.lt.s32.totalorder %s20, 1
        %s218 = scalar_select %p217, %s20, 1
        %s219 = smul.addr %s218, 8
        %s220 = scalar_lea.vmem %s0, %s219
        %s221 = smul.u32 16, %s21
        %s222 = smul.u32 16, %s21
        %p223 = scmp.lt.s32.totalorder %s20, 1
        %s224 = scalar_select %p223, %s20, 1
        %s225 = smul.addr %s224, 8
        %s226 = scalar_lea.vmem %s3, %s225
        %p227 = scmp.eq.s32.totalorder %s21, 0
        // Predicated region
        $region41: #{feed_forward_prepared.1} parent=31 // pred_check
          %p228 = pneg %p227
        $region42: #{feed_forward_prepared.1} parent=31 // pred_check_branch
          %230 = sbr.rel (%p228) target = $region44
        $region43: #{feed_forward_prepared.1} parent=31 // pred_region
          %231 = vst [vmem:[#allocation2] sm:$0xff] 0.0
        $region44: #{feed_forward_prepared.1} parent=31 // pred_fallthru
          _
        %v232 = vld [vmem:[%s220] sm:$0xff]
        %v233 = vld [vmem:[#allocation3] sm:$0xff]
        %v234 = vld [vmem:[#allocation3 + $0x8] sm:$0xff]
        %v235 = vld [vmem:[#allocation3 + $0x10] sm:$0xff]
        %v236 = vld [vmem:[#allocation3 + $0x18] sm:$0xff]
        %v237 = vld [vmem:[#allocation3 + $0x20] sm:$0xff]
        %v238 = vld [vmem:[#allocation3 + $0x28] sm:$0xff]
        %v239 = vld [vmem:[#allocation3 + $0x30] sm:$0xff]
        %v240 = vld [vmem:[#allocation3 + $0x38] sm:$0xff]
        %v241 = vld [vmem:[#allocation3 + $0x40] sm:$0xff]
        %v242 = vld [vmem:[#allocation3 + $0x48] sm:$0xff]
        %v243 = vld [vmem:[#allocation3 + $0x50] sm:$0xff]
        %v244 = vld [vmem:[#allocation3 + $0x58] sm:$0xff]
        %v245 = vld [vmem:[#allocation3 + $0x60] sm:$0xff]
        %v246 = vld [vmem:[#allocation3 + $0x68] sm:$0xff]
        %v247 = vld [vmem:[#allocation3 + $0x70] sm:$0xff]
        %v248 = vld [vmem:[#allocation3 + $0x78] sm:$0xff]
        %v249 = vld [vmem:[#allocation3 + $0x80] sm:$0xff]
        %v250 = vld [vmem:[#allocation3 + $0x88] sm:$0xff]
        %v251 = vld [vmem:[#allocation3 + $0x90] sm:$0xff]
        %v252 = vld [vmem:[#allocation3 + $0x98] sm:$0xff]
        %v253 = vld [vmem:[#allocation3 + $0xa0] sm:$0xff]
        %v254 = vld [vmem:[#allocation3 + $0xa8] sm:$0xff]
        %v255 = vld [vmem:[#allocation3 + $0xb0] sm:$0xff]
        %v256 = vld [vmem:[#allocation3 + $0xb8] sm:$0xff]
        %v257 = vld [vmem:[#allocation3 + $0xc0] sm:$0xff]
        %v258 = vld [vmem:[#allocation3 + $0xc8] sm:$0xff]
        %v259 = vld [vmem:[#allocation3 + $0xd0] sm:$0xff]
        %v260 = vld [vmem:[#allocation3 + $0xd8] sm:$0xff]
        %v261 = vld [vmem:[#allocation3 + $0xe0] sm:$0xff]
        %v262 = vld [vmem:[#allocation3 + $0xe8] sm:$0xff]
        %v263 = vld [vmem:[#allocation3 + $0xf0] sm:$0xff]
        %v264 = vld [vmem:[#allocation3 + $0xf8] sm:$0xff]
        %265 = vmatprep.subr.mxu0 %v234
        %266 = vmatpush1.msra.mxu0 %v233
        %267 = vmatprep.subr.mxu0 %v236
        %268 = vmatpush1.msra.mxu0 %v235
        %269 = vmatprep.subr.mxu0 %v238
        %270 = vmatpush1.msra.mxu0 %v237
        %271 = vmatprep.subr.mxu0 %v240
        %272 = vmatpush1.msra.mxu0 %v239
        %273 = vmatprep.subr.mxu0 %v242
        %274 = vmatpush1.msra.mxu0 %v241
        %275 = vmatprep.subr.mxu0 %v244
        %276 = vmatpush1.msra.mxu0 %v243
        %277 = vmatprep.subr.mxu0 %v246
        %278 = vmatpush1.msra.mxu0 %v245
        %279 = vmatprep.subr.mxu0 %v248
        %280 = vmatpush1.msra.mxu0 %v247
        %281 = vmatprep.subr.mxu0 %v250
        %282 = vmatpush1.msra.mxu0 %v249
        %283 = vmatprep.subr.mxu0 %v252
        %284 = vmatpush1.msra.mxu0 %v251
        %285 = vmatprep.subr.mxu0 %v254
        %286 = vmatpush1.msra.mxu0 %v253
        %287 = vmatprep.subr.mxu0 %v256
        %288 = vmatpush1.msra.mxu0 %v255
        %289 = vmatprep.subr.mxu0 %v258
        %290 = vmatpush1.msra.mxu0 %v257
        %291 = vmatprep.subr.mxu0 %v260
        %292 = vmatpush1.msra.mxu0 %v259
        %293 = vmatprep.subr.mxu0 %v262
        %294 = vmatpush1.msra.mxu0 %v261
        %295 = vmatprep.subr.mxu0 %v264
        %296 = vmatpush1.msra.mxu0 %v263
        %297 = vmatprep.subr.mxu0 0.0
        %298 = vmatpush1.msra.mxu0 0.0
        %299 = vmatprep.subr.mxu0 0.0
        %300 = vmatpush1.msra.mxu0 0.0
        %301 = vmatprep.subr.mxu0 0.0
        %302 = vmatpush1.msra.mxu0 0.0
        %303 = vmatprep.subr.mxu0 0.0
        %304 = vmatpush1.msra.mxu0 0.0
        %305 = vmatprep.subr.mxu0 0.0
        %306 = vmatpush1.msra.mxu0 0.0
        %307 = vmatprep.subr.mxu0 0.0
        %308 = vmatpush1.msra.mxu0 0.0
        %309 = vmatprep.subr.mxu0 0.0
        %310 = vmatpush1.msra.mxu0 0.0
        %311 = vmatprep.subr.mxu0 0.0
        %312 = vmatpush1.msra.mxu0 0.0
        %313 = vmatprep.subr.mxu0 0.0
        %314 = vmatpush1.msra.mxu0 0.0
        %315 = vmatprep.subr.mxu0 0.0
        %316 = vmatpush1.msra.mxu0 0.0
        %317 = vmatprep.subr.mxu0 0.0
        %318 = vmatpush1.msra.mxu0 0.0
        %319 = vmatprep.subr.mxu0 0.0
        %320 = vmatpush1.msra.mxu0 0.0
        %321 = vmatprep.subr.mxu0 0.0
        %322 = vmatpush1.msra.mxu0 0.0
        %323 = vmatprep.subr.mxu0 0.0
        %324 = vmatpush1.msra.mxu0 0.0
        %325 = vmatprep.subr.mxu0 0.0
        %326 = vmatpush1.msra.mxu0 0.0
        %327 = vmatprep.subr.mxu0 0.0
        %328 = vmatpush1.msra.mxu0 0.0
        %329 = vmatprep.mubr.f32.mxu0 0.0
        %330 = vmatmul.mubr.f32.gmra.mrb[0].mxu0 %v232
        %v331 = vpop.f32.mrb[0].mxu0
        %v332 = vadd.f32 0.0, %v331
        %v333 = vpop.f32.mrb[0].mxu0
        %v334 = vadd.f32 0.0, %v333
        %335 = vdwg.mxu0
        %v336 = vxor.u32 %v332, 2147483648
        %v337 = vmul.f32 %v336, 1.442695
        %v338 = vpow.pop %v337
        %v339 = vadd.f32 %v338, 1.0
        %v340 = vrcp.pop %v339
        %v341 = vmul.f32 1.0, %v340
        %v342 = vmul.f32 %v332, %v341
        %v343 = vmul.f32 %v342, %v334
        %v344 = vld [vmem:[#allocation2] sm:$0xff]
        %v345 = vld [vmem:[#allocation5] sm:$0xff]
        %v346 = vld [vmem:[#allocation5 + $0x8] sm:$0xff]
        %v347 = vld [vmem:[#allocation5 + $0x10] sm:$0xff]
        %v348 = vld [vmem:[#allocation5 + $0x18] sm:$0xff]
        %v349 = vld [vmem:[#allocation5 + $0x20] sm:$0xff]
        %v350 = vld [vmem:[#allocation5 + $0x28] sm:$0xff]
        %v351 = vld [vmem:[#allocation5 + $0x30] sm:$0xff]
        %v352 = vld [vmem:[#allocation5 + $0x38] sm:$0xff]
        %v353 = vld [vmem:[#allocation5 + $0x40] sm:$0xff]
        %v354 = vld [vmem:[#allocation5 + $0x48] sm:$0xff]
        %v355 = vld [vmem:[#allocation5 + $0x50] sm:$0xff]
        %v356 = vld [vmem:[#allocation5 + $0x58] sm:$0xff]
        %v357 = vld [vmem:[#allocation5 + $0x60] sm:$0xff]
        %v358 = vld [vmem:[#allocation5 + $0x68] sm:$0xff]
        %v359 = vld [vmem:[#allocation5 + $0x70] sm:$0xff]
        %v360 = vld [vmem:[#allocation5 + $0x78] sm:$0xff]
        %361 = vmatprep.subr.mxu0 0.0
        %362 = vmatpush1.msra.mxu0 %v345
        %363 = vmatprep.subr.mxu0 0.0
        %364 = vmatpush1.msra.mxu0 %v346
        %365 = vmatprep.subr.mxu0 0.0
        %366 = vmatpush1.msra.mxu0 %v347
        %367 = vmatprep.subr.mxu0 0.0
        %368 = vmatpush1.msra.mxu0 %v348
        %369 = vmatprep.subr.mxu0 0.0
        %370 = vmatpush1.msra.mxu0 %v349
        %371 = vmatprep.subr.mxu0 0.0
        %372 = vmatpush1.msra.mxu0 %v350
        %373 = vmatprep.subr.mxu0 0.0
        %374 = vmatpush1.msra.mxu0 %v351
        %375 = vmatprep.subr.mxu0 0.0
        %376 = vmatpush1.msra.mxu0 %v352
        %377 = vmatprep.subr.mxu0 0.0
        %378 = vmatpush1.msra.mxu0 %v353
        %379 = vmatprep.subr.mxu0 0.0
        %380 = vmatpush1.msra.mxu0 %v354
        %381 = vmatprep.subr.mxu0 0.0
        %382 = vmatpush1.msra.mxu0 %v355
        %383 = vmatprep.subr.mxu0 0.0
        %384 = vmatpush1.msra.mxu0 %v356
        %385 = vmatprep.subr.mxu0 0.0
        %386 = vmatpush1.msra.mxu0 %v357
        %387 = vmatprep.subr.mxu0 0.0
        %388 = vmatpush1.msra.mxu0 %v358
        %389 = vmatprep.subr.mxu0 0.0
        %390 = vmatpush1.msra.mxu0 %v359
        %391 = vmatprep.subr.mxu0 0.0
        %392 = vmatpush1.msra.mxu0 %v360
        %393 = vmatprep.subr.mxu0 0.0
        %394 = vmatpush1.msra.mxu0 0.0
        %395 = vmatprep.subr.mxu0 0.0
        %396 = vmatpush1.msra.mxu0 0.0
        %397 = vmatprep.subr.mxu0 0.0
        %398 = vmatpush1.msra.mxu0 0.0
        %399 = vmatprep.subr.mxu0 0.0
        %400 = vmatpush1.msra.mxu0 0.0
        %401 = vmatprep.subr.mxu0 0.0
        %402 = vmatpush1.msra.mxu0 0.0
        %403 = vmatprep.subr.mxu0 0.0
        %404 = vmatpush1.msra.mxu0 0.0
        %405 = vmatprep.subr.mxu0 0.0
        %406 = vmatpush1.msra.mxu0 0.0
        %407 = vmatprep.subr.mxu0 0.0
        %408 = vmatpush1.msra.mxu0 0.0
        %409 = vmatprep.subr.mxu0 0.0
        %410 = vmatpush1.msra.mxu0 0.0
        %411 = vmatprep.subr.mxu0 0.0
        %412 = vmatpush1.msra.mxu0 0.0
        %413 = vmatprep.subr.mxu0 0.0
        %414 = vmatpush1.msra.mxu0 0.0
        %415 = vmatprep.subr.mxu0 0.0
        %416 = vmatpush1.msra.mxu0 0.0
        %417 = vmatprep.subr.mxu0 0.0
        %418 = vmatpush1.msra.mxu0 0.0
        %419 = vmatprep.subr.mxu0 0.0
        %420 = vmatpush1.msra.mxu0 0.0
        %421 = vmatprep.subr.mxu0 0.0
        %422 = vmatpush1.msra.mxu0 0.0
        %423 = vmatprep.subr.mxu0 0.0
        %424 = vmatpush1.msra.mxu0 0.0
        %425 = vmatprep.mubr.f32.mxu0 0.0
        %426 = vmatmul.mubr.f32.gmra.mrb[0].mxu0 %v343
        %v427 = vpop.f32.mrb[0].mxu0
        %v428 = vadd.f32 0.0, %v427
        %v429 = vpop.f32.mrb[0].mxu0
        %430 = vdwg.mxu0
        %v431 = vadd.f32 %v344, %v428
        %432 = vst [vmem:[#allocation2] sm:$0xff] %v431
        // Predicated region
        $region45: #{feed_forward_prepared.1} parent=31 // pred_check
          %p433 = pneg %p227
        $region46: #{feed_forward_prepared.1} parent=31 // pred_check_branch
          %435 = sbr.rel (%p433) target = $region48
        $region47: #{feed_forward_prepared.1} parent=31 // pred_region
          %v436 = vld [vmem:[#allocation2] sm:$0xff]
          %437 = vst [vmem:[%s226] sm:$0xff] %v436
        $region48: #{feed_forward_prepared.1} parent=31 // pred_fallthru
          _
        %p438 = scmp.lt.s32.totalorder %s20, 1
        %s439 = scalar_select %p438, %s20, 1
        %s440 = smul.addr %s439, 8
        %s441 = scalar_lea.vmem %s3, %s440
        // Predicated region
        $region49: #{feed_forward_prepared.1} parent=31 // pred_check
          %p442 = pneg %p124
        $region50: #{feed_forward_prepared.1} parent=31 // pred_check_branch
          %444 = sbr.rel (%p442) target = $region52
        $region51: #{feed_forward_prepared.1} parent=31 // pred_region
          _
        $region52: #{feed_forward_prepared.1} parent=31 // pred_fallthru
          _
      $region32: #{feed_forward_prepared.1} parent=5 // pred_fallthru
        _
      %p445 = scmp.le.s32.totalorder 2, %s11
      // Predicated region
      $region53: #{feed_forward_prepared.1} parent=5 // pred_check
        %p446 = pneg %p445
      $region54: #{feed_forward_prepared.1} parent=5 // pred_check_branch
        %448 = sbr.rel (%p446) target = $region56
      $region55: #{feed_forward_prepared.1} parent=5 // pred_region
        %s449 = ssub.s32 %s11, 2
        // Predicated region
        $region57: #{feed_forward_prepared.1} parent=55 // pred_check
          %p450 = pneg %p130
        $region58: #{feed_forward_prepared.1} parent=55 // pred_check_branch
          %452 = sbr.rel (%p450) target = $region60
        $region59: #{feed_forward_prepared.1} parent=55 // pred_region
          %p453 = scmp.lt.s32.totalorder %s22, 1
          %s454 = scalar_select %p453, %s22, 1
          %s455 = smul.addr %s454, 8
          %s456 = scalar_lea.vmem %s3, %s455
        $region60: #{feed_forward_prepared.1} parent=55 // pred_fallthru
          _
      $region56: #{feed_forward_prepared.1} parent=5 // pred_fallthru
        _
    $region6: #{feed_forward_prepared.1} parent=1 // loop_footer
      %s15 = sadd.s32 1, %s11
    $region7: #{feed_forward_prepared.1} parent=1 // loop_footer_branch
      %10 = sbr.rel target = $region3
    $region8: #{feed_forward_prepared.1} parent=1 // loop_exit
      _
    %457 = vsyncpa [#allocation4], 1
    %s458 = scalar_lea.sflag [#allocation4], 1
    %459 = vsyncpa %s458, 1
    %460 = vsyncpa [#allocation6], 1

</llo_original>
